<compile_context>
chip_gen: v7x
topology: tpu7x:2x2x1
jax: 0.10.0
libtpu: 0.0.40
codegen_flags: <defaults>
</compile_context>

<pallas_src>
import functools

import jax
import jax.numpy as jnp
import numpy as np
from jax.experimental import pallas as pl
from jax.experimental.pallas import tpu as pltpu

B, IN, H, OUT, NC = 2, 64, 32, 10, 10
EPS = 0.1


def dual_objective_kernel(c_ref, pb_ref, w1_ref, w2_ref, bias_ref, eps_ref,
                          out_ref, *, in_dim, h_dim, out_dim):
    eps = eps_ref[0, 0]                                   # SMEM scalar

    c3 = c_ref[...]                                       # (B, NCp, OUT)
    b_sz, ncp, _ = c3.shape
    m = b_sz * ncp

    # Per-example operands, unexpanded: one (B, IN+2H) slab, broadcast over NCp.
    x = pb_ref[:, 0:in_dim][:, None, :]                   # (B, 1, IN)
    d = pb_ref[:, in_dim:in_dim + h_dim][:, None, :]      # (B, 1, H)
    zli = pb_ref[:, in_dim + h_dim:in_dim + 2 * h_dim][:, None, :]  # (B, 1, H)
    b1 = bias_ref[:, 0:h_dim]                             # (1, H)
    b2 = bias_ref[:, h_dim:h_dim + out_dim]               # (1, OUT)

    # nu back-propagation ("T" chain), all M = B*NCp rows in two MXU matmuls.
    nu1 = jnp.dot(-c3.reshape(m, out_dim), w2_ref[...],
                  preferred_element_type=jnp.float32)     # (M, H)
    nu2 = d * nu1.reshape(b_sz, ncp, h_dim)               # (B, NCp, H)
    nu3 = jnp.dot(nu2.reshape(m, h_dim), w1_ref[...],
                  preferred_element_type=jnp.float32
                  ).reshape(b_sz, ncp, in_dim)            # (B, NCp, IN)

    # InfBall.objective: -nu3.x - eps*||nu3||_1  (one fused lane reduce over IN)
    red_in = -jnp.sum(nu3 * x + eps * jnp.abs(nu3), axis=-1)           # (B, NCp)

    # DualLinear(lin1).objective + DualReLU.objective (one lane reduce over H)
    red_h = jnp.sum(jnp.maximum(nu2, 0.0) * zli - nu2 * b1, axis=-1)   # (B, NCp)

    # last DualLinear.objective: c.b2 as a VPU mul + XLU lane reduce (no MXU).
    obj_l2 = jnp.sum(c3 * b2, axis=-1)                                 # (B, NCp)

    out_ref[...] = red_in + red_h + obj_l2


def dual_network_forward(c, X, W1, b1, W2, b2, d, zl, I_mask, epsilon):
    B_, NC_, OUT_ = c.shape
    IN_ = X.shape[1]
    H_ = W1.shape[0]
    NCp = ((NC_ + 7) // 8) * 8          # pad objective dim to a sublane multiple

    # Wrapper glue (no per-example expansion):
    #  - zero-pad the NC axis so all tiles / MXU LHS rows are unmasked,
    #  - pack per-example operands into one lane-dense (B, IN+2H) slab,
    #  - pack biases into one (1, H+OUT) row,
    #  - eps as an SMEM scalar.
    c_pad = jnp.pad(c, ((0, 0), (0, NCp - NC_), (0, 0)))
    per_batch = jnp.concatenate([X, d, zl * I_mask], axis=1)   # (B, IN+2H)
    bias = jnp.concatenate([b1, b2]).reshape(1, H_ + OUT_)     # (1, H+OUT)
    eps_arr = jnp.full((1, 1), epsilon, dtype=jnp.float32)

    vmem = pl.BlockSpec(memory_space=pltpu.MemorySpace.VMEM)
    smem = pl.BlockSpec(memory_space=pltpu.MemorySpace.SMEM)

    kernel = functools.partial(dual_objective_kernel,
                               in_dim=IN_, h_dim=H_, out_dim=OUT_)

    out = pl.pallas_call(
        kernel,
        out_shape=jax.ShapeDtypeStruct((B_, NCp), jnp.float32),
        in_specs=[
            vmem,   # c_pad      (B, NCp, OUT)
            vmem,   # per_batch  (B, IN+2H)
            vmem,   # W1         (H, IN)
            vmem,   # W2         (OUT, H)
            vmem,   # bias       (1, H+OUT)
            smem,   # eps        (1, 1)
        ],
        out_specs=vmem,
    )(c_pad, per_batch, W1, W2, bias, eps_arr)

    return out[:, :NC_]     # drop the zero-padded objective rows


def build_dual_relu_params(X, W1, b1, epsilon):
    """Init-time bound pass (plain JAX glue), exact for the first ReLU layer:
       zl/zu = X W1^T + b1 -/+ eps * ||W1||_{1,row};  d, I as in select_layer."""
    z_hat = X @ W1.T + b1                                   # (B, H)
    l1 = epsilon * jnp.sum(jnp.abs(W1), axis=1)             # (H,)
    zl = z_hat - l1
    zu = z_hat + l1
    I = (zl < 0) & (zu > 0)
    d = (zl >= 0).astype(jnp.float32)
    d = d + jnp.where(I, zu / jnp.where(I, zu - zl, 1.0), 0.0)
    return d, zl, I.astype(jnp.float32)


def dual_forward_ref(c, X, W1, b1, W2, b2, d, zl, I_mask, epsilon):
    """Pure-JAX reference of DualNetwork.forward(c)."""
    nu0 = -c
    nu1 = jnp.einsum('bco,oh->bch', nu0, W2)
    nu2 = d[:, None, :] * nu1
    nu3 = jnp.einsum('bch,hi->bci', nu2, W1)
    obj_in = -jnp.einsum('bci,bi->bc', nu3, X) - epsilon * jnp.sum(jnp.abs(nu3), -1)
    obj_l1 = -jnp.einsum('bch,h->bc', nu2, b1)
    obj_relu = jnp.sum(jnp.maximum(nu2, 0.0) * (zl * I_mask)[:, None, :], -1)
    obj_l2 = jnp.einsum('bco,o->bc', c, b2)
    return obj_in + obj_l1 + obj_relu + obj_l2


if __name__ == "__main__":
    key = jax.random.PRNGKey(0)
    kx, kc, kw1, kb1, kw2, kb2 = jax.random.split(key, 6)

    X = jax.random.normal(kx, (B, IN), jnp.float32)
    c = jax.random.normal(kc, (B, NC, OUT), jnp.float32)

    # deterministic parameter init for Linear(IN,H) -> ReLU -> Linear(H,OUT)
    W1 = jax.random.normal(kw1, (H, IN), jnp.float32) / np.sqrt(IN)
    b1 = jax.random.normal(kb1, (H,), jnp.float32) * 0.1
    W2 = jax.random.normal(kw2, (OUT, H), jnp.float32) / np.sqrt(H)
    b2 = jax.random.normal(kb2, (OUT,), jnp.float32) * 0.1

    d, zl, I_mask = build_dual_relu_params(X, W1, b1, EPS)

    out = dual_network_forward(c, X, W1, b1, W2, b2, d, zl, I_mask, EPS)
    out = jax.block_until_ready(out)

    ref = dual_forward_ref(c, X, W1, b1, W2, b2, d, zl, I_mask, EPS)
    np.testing.assert_allclose(np.asarray(out), np.asarray(ref), rtol=2e-2, atol=2e-2)

    print("KERNEL_OK")
</pallas_src>

<mosaic_0001>
module attributes {stable_mosaic.version = 11 : i64} {
  func.func @dual_objective_kernel(%arg0: memref<2x16x10xf32, #tpu.memory_space<vmem>>, %arg1: memref<2x128xf32, #tpu.memory_space<vmem>>, %arg2: memref<32x64xf32, #tpu.memory_space<vmem>>, %arg3: memref<10x32xf32, #tpu.memory_space<vmem>>, %arg4: memref<1x42xf32, #tpu.memory_space<vmem>>, %arg5: memref<1x1xf32, #tpu.memory_space<smem>>, %arg6: memref<2x16xf32, #tpu.memory_space<vmem>>) attributes {dimension_semantics = [], scalar_prefetch = 0 : i64, scratch_operands = 0 : i64, tpu.core_type = #tpu.core_type<tc>} {
    %c0 = arith.constant 0 : index
    %c0_0 = arith.constant 0 : index
    %0 = memref.load %arg5[%c0, %c0_0] : memref<1x1xf32, #tpu.memory_space<smem>>
    %c0_1 = arith.constant 0 : index
    %c0_2 = arith.constant 0 : index
    %c0_3 = arith.constant 0 : index
    %1 = vector.load %arg0[%c0_1, %c0_2, %c0_3] : memref<2x16x10xf32, #tpu.memory_space<vmem>>, vector<2x16x10xf32>
    %c0_4 = arith.constant 0 : index
    %c0_5 = arith.constant 0 : index
    %2 = vector.load %arg1[%c0_4, %c0_5] : memref<2x128xf32, #tpu.memory_space<vmem>>, vector<2x64xf32>
    %3 = vector.shape_cast %2 : vector<2x64xf32> to vector<2x1x64xf32>
    %c0_6 = arith.constant 0 : index
    %c64 = arith.constant 64 : index
    %4 = vector.load %arg1[%c0_6, %c64] : memref<2x128xf32, #tpu.memory_space<vmem>>, vector<2x32xf32>
    %5 = vector.shape_cast %4 : vector<2x32xf32> to vector<2x1x32xf32>
    %c0_7 = arith.constant 0 : index
    %c96 = arith.constant 96 : index
    %6 = vector.load %arg1[%c0_7, %c96] : memref<2x128xf32, #tpu.memory_space<vmem>>, vector<2x32xf32>
    %7 = vector.shape_cast %6 : vector<2x32xf32> to vector<2x1x32xf32>
    %c0_8 = arith.constant 0 : index
    %c0_9 = arith.constant 0 : index
    %8 = vector.load %arg4[%c0_8, %c0_9] : memref<1x42xf32, #tpu.memory_space<vmem>>, vector<1x32xf32>
    %c0_10 = arith.constant 0 : index
    %c32 = arith.constant 32 : index
    %9 = vector.load %arg4[%c0_10, %c32] : memref<1x42xf32, #tpu.memory_space<vmem>>, vector<1x10xf32>
    %10 = vector.shape_cast %1 : vector<2x16x10xf32> to vector<32x10xf32>
    %cst = arith.constant 0.000000e+00 : f32
    %11 = vector.broadcast %cst : f32 to vector<32x10xf32>
    %12 = arith.subf %11, %10 : vector<32x10xf32>
    %c0_11 = arith.constant 0 : index
    %c0_12 = arith.constant 0 : index
    %13 = vector.load %arg3[%c0_11, %c0_12] : memref<10x32xf32, #tpu.memory_space<vmem>>, vector<10x32xf32>
    %cst_13 = arith.constant dense<0.000000e+00> : vector<32x32xf32>
    %14 = tpu.matmul %12, %13, %cst_13 {dimension_numbers = #tpu.dot_dimension_numbers<[1], [0], [0], [1], [0, 0, 1, 1], [], []>} : vector<32x10xf32>, vector<10x32xf32>, vector<32x32xf32> -> vector<32x32xf32>
    %15 = vector.shape_cast %14 : vector<32x32xf32> to vector<2x16x32xf32>
    %16 = vector.broadcast %5 : vector<2x1x32xf32> to vector<2x16x32xf32>
    %17 = arith.mulf %16, %15 : vector<2x16x32xf32>
    %18 = vector.shape_cast %17 : vector<2x16x32xf32> to vector<32x32xf32>
    %c0_14 = arith.constant 0 : index
    %c0_15 = arith.constant 0 : index
    %19 = vector.load %arg2[%c0_14, %c0_15] : memref<32x64xf32, #tpu.memory_space<vmem>>, vector<32x64xf32>
    %cst_16 = arith.constant dense<0.000000e+00> : vector<32x64xf32>
    %20 = tpu.matmul %18, %19, %cst_16 {dimension_numbers = #tpu.dot_dimension_numbers<[1], [0], [0], [1], [0, 0, 1, 1], [], []>} : vector<32x32xf32>, vector<32x64xf32>, vector<32x64xf32> -> vector<32x64xf32>
    %21 = vector.shape_cast %20 : vector<32x64xf32> to vector<2x16x64xf32>
    %22 = vector.broadcast %3 : vector<2x1x64xf32> to vector<2x16x64xf32>
    %23 = arith.mulf %21, %22 : vector<2x16x64xf32>
    %24 = math.absf %21 : vector<2x16x64xf32>
    %25 = vector.broadcast %0 : f32 to vector<2x16x64xf32>
    %26 = arith.mulf %25, %24 : vector<2x16x64xf32>
    %27 = arith.addf %23, %26 : vector<2x16x64xf32>
    %cst_17 = arith.constant dense<0.000000e+00> : vector<2x16xf32>
    %28 = vector.multi_reduction <add>, %27, %cst_17 [2] : vector<2x16x64xf32> to vector<2x16xf32>
    %cst_18 = arith.constant 0.000000e+00 : f32
    %29 = vector.broadcast %cst_18 : f32 to vector<2x16xf32>
    %30 = arith.subf %29, %28 : vector<2x16xf32>
    %cst_19 = arith.constant 0.000000e+00 : f32
    %31 = vector.broadcast %cst_19 : f32 to vector<2x16x32xf32>
    %32 = arith.maximumf %17, %31 : vector<2x16x32xf32>
    %33 = vector.broadcast %7 : vector<2x1x32xf32> to vector<2x16x32xf32>
    %34 = arith.mulf %32, %33 : vector<2x16x32xf32>
    %35 = vector.shape_cast %8 : vector<1x32xf32> to vector<1x1x32xf32>
    %36 = vector.broadcast %35 : vector<1x1x32xf32> to vector<2x16x32xf32>
    %37 = arith.mulf %17, %36 : vector<2x16x32xf32>
    %38 = arith.subf %34, %37 : vector<2x16x32xf32>
    %cst_20 = arith.constant dense<0.000000e+00> : vector<2x16xf32>
    %39 = vector.multi_reduction <add>, %38, %cst_20 [2] : vector<2x16x32xf32> to vector<2x16xf32>
    %40 = vector.shape_cast %9 : vector<1x10xf32> to vector<1x1x10xf32>
    %41 = vector.broadcast %40 : vector<1x1x10xf32> to vector<2x16x10xf32>
    %42 = arith.mulf %1, %41 : vector<2x16x10xf32>
    %cst_21 = arith.constant dense<0.000000e+00> : vector<2x16xf32>
    %43 = vector.multi_reduction <add>, %42, %cst_21 [2] : vector<2x16x10xf32> to vector<2x16xf32>
    %44 = arith.addf %30, %39 : vector<2x16xf32>
    %45 = arith.addf %44, %43 : vector<2x16xf32>
    %c0_22 = arith.constant 0 : index
    %c0_23 = arith.constant 0 : index
    %46 = vector.load %arg6[%c0_22, %c0_23] : memref<2x16xf32, #tpu.memory_space<vmem>>, vector<2x16xf32>
    tpu.vector_store %arg6[%c0_22, %c0_23], %45 {strides = array<i32>} : memref<2x16xf32, #tpu.memory_space<vmem>>, vector<2x16xf32>,
    return
  }
}

</mosaic_0001>

<llo_original>
// kernel: tpu_custom_call.1
$region0: #{tpu_custom_call.1}
  #allocation0 [shape = 'u32[]', space=smem, size = 0x4, offset = 0x4, fixed_abs, tag = 'smem constant byte address 0x4 - core index']
  #allocation1 [shape = 'u32[144,128]{1,0:T(1,128)}', space=vmem, size = 0x12000, scoped, tag = 'internal scratch']
  #allocation2 [shape = 'f32[1,1]{1,0:T(1,128)S(6)}', space=smem, size = 0x200, scoped, tag = 'scoped memory for tpu_custom_call.1']
  %s0 = inlined_call_operand.vmem [shape: f32[2,16,10], index: 0, kind: input, shape index: {}]
  %s1 = inlined_call_operand.vmem [shape: f32[2,128], index: 1, kind: input, shape index: {}]
  %s2 = inlined_call_operand.vmem [shape: f32[32,64], index: 2, kind: input, shape index: {}]
  %s3 = inlined_call_operand.vmem [shape: f32[10,32], index: 3, kind: input, shape index: {}]
  %s4 = inlined_call_operand.vmem [shape: f32[1,42], index: 4, kind: input, shape index: {}]
  %s5 = inlined_call_operand.<no memory space> [shape: f32[1,1], index: 5, kind: input, shape index: {}]
  %s6 = inlined_call_operand.hbm [shape: f32[2,16], index: 6, kind: output, shape index: {}]
  %s7 = sld [smem:[#allocation0]]
  $region34: #{tpu_custom_call.1} parent=0
    _
  %s9 = ssub.s32 1, %s7
  %s10 = scalar_select 0, %s9, %s7
  %11 = sst [smem:[#allocation2]] %s5
  $region1: #{tpu_custom_call.1} parent=0
    #allocation3 [shape = 'u8[1024]{0}', space=vmem, size = 0x400, scoped, tag = 'output window, operand 0, single buffered']
    #allocation4 [shape = 's32[1]{0}', space=sflag, size = 0x4, scoped, tag = 'scoped memory for tpu_custom_call.1']
    %12 = vsyncpa [#allocation4], 0
    // Predicated region
    $region2: #{tpu_custom_call.1} parent=1 // pred_check
      _
    $region3: #{tpu_custom_call.1} parent=1 // pred_check_branch
      %14 = sbr.rel (0) target = $region5
    $region4: #{tpu_custom_call.1} parent=1 // pred_region
      _
    $region5: #{tpu_custom_call.1} parent=1 // pred_fallthru
      _
    // Predicated region
    $region6: #{tpu_custom_call.1} parent=1 // pred_check
      _
    $region7: #{tpu_custom_call.1} parent=1 // pred_check_branch
      %16 = sbr.rel (0) target = $region9
    $region8: #{tpu_custom_call.1} parent=1 // pred_region
      _
    $region9: #{tpu_custom_call.1} parent=1 // pred_fallthru
      _
    // Predicated region
    $region10: #{tpu_custom_call.1} parent=1 // pred_check
      _
    $region11: #{tpu_custom_call.1} parent=1 // pred_check_branch
      %18 = sbr.rel (0) target = $region13
    $region12: #{tpu_custom_call.1} parent=1 // pred_region
      _
    $region13: #{tpu_custom_call.1} parent=1 // pred_fallthru
      _
    // Predicated region
    $region14: #{tpu_custom_call.1} parent=1 // pred_check
      _
    $region15: #{tpu_custom_call.1} parent=1 // pred_check_branch
      %20 = sbr.rel (0) target = $region17
    $region16: #{tpu_custom_call.1} parent=1 // pred_region
      _
    $region17: #{tpu_custom_call.1} parent=1 // pred_fallthru
      _
    // Predicated region
    $region18: #{tpu_custom_call.1} parent=1 // pred_check
      _
    $region19: #{tpu_custom_call.1} parent=1 // pred_check_branch
      %22 = sbr.rel (0) target = $region21
    $region20: #{tpu_custom_call.1} parent=1 // pred_region
      _
    $region21: #{tpu_custom_call.1} parent=1 // pred_fallthru
      _
    // Predicated region
    $region22: #{tpu_custom_call.1} parent=1 // pred_check
      _
    $region23: #{tpu_custom_call.1} parent=1 // pred_check_branch
      %24 = sbr.rel (0) target = $region25
    $region24: #{tpu_custom_call.1} parent=1 // pred_region
      _
    $region25: #{tpu_custom_call.1} parent=1 // pred_fallthru
      _
    %s25 = sld [smem:[#allocation2]]
    %v26 = vld [vmem:[%s0] sm:$0xff]
    %v27 = vld [vmem:[%s0 + $0x8] sm:$0xff]
    %v28 = vld [vmem:[%s0 + $0x10] sm:$0xff]
    %v29 = vld [vmem:[%s0 + $0x18] sm:$0xff]
    %v30 = vld [vmem:[%s1] sm:$0x3]
    %v33 = vunpack.c.l.s4 1966171168
    %v34 = vunpack.c.0.s8 %v33
    %v35 = vlaneseq
    %v36 = vshrl.u32 %v35, 7
    %v37 = vsub.s32 %v34, %v36
    %v38 = vrot.slane %v30, %v37
    %v39 = vcombine.high %v38, %v38
    %v41 = vunpack.c.l.s4 1966171168
    %v42 = vunpack.c.0.s8 %v41
    %v43 = vlaneseq
    %v44 = vshrl.u32 %v43, 7
    %v45 = vsub.s32 %v42, %v44
    %v46 = vrot.slane %v38, %v45
    %v48 = vunpack.c.l.s4 1966171168
    %v49 = vunpack.c.0.s8 %v48
    %v50 = vlaneseq
    %v51 = vshrl.u32 %v50, 7
    %v52 = vsub.s32 %v49, %v51
    %v53 = vrot.slane %v39, %v52
    %v54 = vld [vmem:[%s4] sm:$0x1]
    %v55 = vsub.f32 0.0, %v26
    %v56 = vsub.f32 0.0, %v27
    %v57 = vsub.f32 0.0, %v28
    %v58 = vsub.f32 0.0, %v29
    %v59 = vld [vmem:[%s3] sm:$0xff]
    %v60 = vld [vmem:[%s3 + $0x8] sm:$0x3]
    %vm61 = vcmask 80896
    %v63 = vsel %vm61, %v55, 0
    %v66 = vsel %vm61, %v56, 0
    %v69 = vsel %vm61, %v57, 0
    %v72 = vsel %vm61, %v58, 0
    %vm74 = vcmask 1041408
    %v76 = vsel %vm74, %v60, 0
    %78 = vmatprep.subr.mxu0 0.0
    %79 = vmatpush1.msra.mxu0 %v59
    %80 = vmatprep.subr.mxu0 0.0
    %81 = vmatpush1.msra.mxu0 %v76
    %82 = vmatprep.subr.mxu0 0.0
    %83 = vmatpush1.msra.mxu0 0.0
    %84 = vmatprep.subr.mxu0 0.0
    %85 = vmatpush1.msra.mxu0 0.0
    %86 = vmatprep.subr.mxu0 0.0
    %87 = vmatpush1.msra.mxu0 0.0
    %88 = vmatprep.subr.mxu0 0.0
    %89 = vmatpush1.msra.mxu0 0.0
    %90 = vmatprep.subr.mxu0 0.0
    %91 = vmatpush1.msra.mxu0 0.0
    %92 = vmatprep.subr.mxu0 0.0
    %93 = vmatpush1.msra.mxu0 0.0
    %94 = vmatprep.subr.mxu0 0.0
    %95 = vmatpush1.msra.mxu0 0.0
    %96 = vmatprep.subr.mxu0 0.0
    %97 = vmatpush1.msra.mxu0 0.0
    %98 = vmatprep.subr.mxu0 0.0
    %99 = vmatpush1.msra.mxu0 0.0
    %100 = vmatprep.subr.mxu0 0.0
    %101 = vmatpush1.msra.mxu0 0.0
    %102 = vmatprep.subr.mxu0 0.0
    %103 = vmatpush1.msra.mxu0 0.0
    %104 = vmatprep.subr.mxu0 0.0
    %105 = vmatpush1.msra.mxu0 0.0
    %106 = vmatprep.subr.mxu0 0.0
    %107 = vmatpush1.msra.mxu0 0.0
    %108 = vmatprep.subr.mxu0 0.0
    %109 = vmatpush1.msra.mxu0 0.0
    %110 = vmatprep.subr.mxu0 0.0
    %111 = vmatpush1.msra.mxu0 0.0
    %112 = vmatprep.subr.mxu0 0.0
    %113 = vmatpush1.msra.mxu0 0.0
    %114 = vmatprep.subr.mxu0 0.0
    %115 = vmatpush1.msra.mxu0 0.0
    %116 = vmatprep.subr.mxu0 0.0
    %117 = vmatpush1.msra.mxu0 0.0
    %118 = vmatprep.subr.mxu0 0.0
    %119 = vmatpush1.msra.mxu0 0.0
    %120 = vmatprep.subr.mxu0 0.0
    %121 = vmatpush1.msra.mxu0 0.0
    %122 = vmatprep.subr.mxu0 0.0
    %123 = vmatpush1.msra.mxu0 0.0
    %124 = vmatprep.subr.mxu0 0.0
    %125 = vmatpush1.msra.mxu0 0.0
    %126 = vmatprep.subr.mxu0 0.0
    %127 = vmatpush1.msra.mxu0 0.0
    %128 = vmatprep.subr.mxu0 0.0
    %129 = vmatpush1.msra.mxu0 0.0
    %130 = vmatprep.subr.mxu0 0.0
    %131 = vmatpush1.msra.mxu0 0.0
    %132 = vmatprep.subr.mxu0 0.0
    %133 = vmatpush1.msra.mxu0 0.0
    %134 = vmatprep.subr.mxu0 0.0
    %135 = vmatpush1.msra.mxu0 0.0
    %136 = vmatprep.subr.mxu0 0.0
    %137 = vmatpush1.msra.mxu0 0.0
    %138 = vmatprep.subr.mxu0 0.0
    %139 = vmatpush1.msra.mxu0 0.0
    %140 = vmatprep.subr.mxu0 0.0
    %141 = vmatpush1.msra.mxu0 0.0
    %142 = vmatprep.mubr.f32.mxu0 0.0
    %143 = vmatmul.mubr.f32.gmra.mrb[0].mxu0 %v63
    %v144 = vpop.f32.mrb[0].mxu0
    %v145 = vadd.f32 0.0, %v144
    %v146 = vpop.f32.mrb[0].mxu0
    %147 = vmatprep.mubr.f32.mxu0 0.0
    %148 = vmatmul.mubr.f32.gmra.mrb[0].mxu0 %v66
    %v149 = vpop.f32.mrb[0].mxu0
    %v150 = vadd.f32 0.0, %v149
    %v151 = vpop.f32.mrb[0].mxu0
    %152 = vmatprep.mubr.f32.mxu0 0.0
    %153 = vmatmul.mubr.f32.gmra.mrb[0].mxu0 %v69
    %v154 = vpop.f32.mrb[0].mxu0
    %v155 = vadd.f32 0.0, %v154
    %v156 = vpop.f32.mrb[0].mxu0
    %157 = vmatprep.mubr.f32.mxu0 0.0
    %158 = vmatmul.mubr.f32.gmra.mrb[0].mxu0 %v72
    %v159 = vpop.f32.mrb[0].mxu0
    %v160 = vadd.f32 0.0, %v159
    %v161 = vpop.f32.mrb[0].mxu0
    %162 = vdwg.mxu0
    %v163 = vlaneseq
    %v164 = vshrl.u32 %v163, 7
    %v165 = vsub.s32 0, %v164
    %v166 = vrot.slane %v46, %v165
    %v167 = vlaneseq
    %v168 = vshrl.u32 %v167, 7
    %v169 = vsub.s32 0, %v168
    %v170 = vrot.slane %v53, %v169
    %177 = vrot.lane.b32.xlu0 %v145, 64
    %v178 = vpop.permute.xlu0 %177
    %179 = vrot.lane.b32.xlu0 %v150, 64
    %v180 = vpop.permute.xlu0 %179
    %181 = vrot.lane.b32.xlu0 %v155, 64
    %v182 = vpop.permute.xlu0 %181
    %183 = vrot.lane.b32.xlu0 %v160, 64
    %v184 = vpop.permute.xlu0 %183
    %v189 = vmul.f32 %v166, %v178
    %v190 = vmul.f32 %v166, %v180
    %v191 = vmul.f32 %v170, %v182
    %v192 = vmul.f32 %v170, %v184
    %v193 = vld [vmem:[%s2] sm:$0xff]
    %v194 = vld [vmem:[%s2 + $0x8] sm:$0xff]
    %v195 = vld [vmem:[%s2 + $0x10] sm:$0xff]
    %v196 = vld [vmem:[%s2 + $0x18] sm:$0xff]
    %201 = vrot.lane.b32.xlu0 %v189, 64
    %v202 = vpop.permute.xlu0 %201
    %203 = vrot.lane.b32.xlu0 %v190, 64
    %v204 = vpop.permute.xlu0 %203
    %205 = vrot.lane.b32.xlu0 %v191, 64
    %v206 = vpop.permute.xlu0 %205
    %207 = vrot.lane.b32.xlu0 %v192, 64
    %v208 = vpop.permute.xlu0 %207
    %vm209 = vcmask 261120
    %v210 = vsel %vm209, %v202, 0
    %v212 = vsel %vm209, %v204, 0
    %v214 = vsel %vm209, %v206, 0
    %v216 = vsel %vm209, %v208, 0
    %218 = vmatprep.subr.mxu0 0.0
    %219 = vmatpush1.msra.mxu0 %v193
    %220 = vmatprep.subr.mxu0 0.0
    %221 = vmatpush1.msra.mxu0 %v194
    %222 = vmatprep.subr.mxu0 0.0
    %223 = vmatpush1.msra.mxu0 %v195
    %224 = vmatprep.subr.mxu0 0.0
    %225 = vmatpush1.msra.mxu0 %v196
    %226 = vmatprep.subr.mxu0 0.0
    %227 = vmatpush1.msra.mxu0 0.0
    %228 = vmatprep.subr.mxu0 0.0
    %229 = vmatpush1.msra.mxu0 0.0
    %230 = vmatprep.subr.mxu0 0.0
    %231 = vmatpush1.msra.mxu0 0.0
    %232 = vmatprep.subr.mxu0 0.0
    %233 = vmatpush1.msra.mxu0 0.0
    %234 = vmatprep.subr.mxu0 0.0
    %235 = vmatpush1.msra.mxu0 0.0
    %236 = vmatprep.subr.mxu0 0.0
    %237 = vmatpush1.msra.mxu0 0.0
    %238 = vmatprep.subr.mxu0 0.0
    %239 = vmatpush1.msra.mxu0 0.0
    %240 = vmatprep.subr.mxu0 0.0
    %241 = vmatpush1.msra.mxu0 0.0
    %242 = vmatprep.subr.mxu0 0.0
    %243 = vmatpush1.msra.mxu0 0.0
    %244 = vmatprep.subr.mxu0 0.0
    %245 = vmatpush1.msra.mxu0 0.0
    %246 = vmatprep.subr.mxu0 0.0
    %247 = vmatpush1.msra.mxu0 0.0
    %248 = vmatprep.subr.mxu0 0.0
    %249 = vmatpush1.msra.mxu0 0.0
    %250 = vmatprep.subr.mxu0 0.0
    %251 = vmatpush1.msra.mxu0 0.0
    %252 = vmatprep.subr.mxu0 0.0
    %253 = vmatpush1.msra.mxu0 0.0
    %254 = vmatprep.subr.mxu0 0.0
    %255 = vmatpush1.msra.mxu0 0.0
    %256 = vmatprep.subr.mxu0 0.0
    %257 = vmatpush1.msra.mxu0 0.0
    %258 = vmatprep.subr.mxu0 0.0
    %259 = vmatpush1.msra.mxu0 0.0
    %260 = vmatprep.subr.mxu0 0.0
    %261 = vmatpush1.msra.mxu0 0.0
    %262 = vmatprep.subr.mxu0 0.0
    %263 = vmatpush1.msra.mxu0 0.0
    %264 = vmatprep.subr.mxu0 0.0
    %265 = vmatpush1.msra.mxu0 0.0
    %266 = vmatprep.subr.mxu0 0.0
    %267 = vmatpush1.msra.mxu0 0.0
    %268 = vmatprep.subr.mxu0 0.0
    %269 = vmatpush1.msra.mxu0 0.0
    %270 = vmatprep.subr.mxu0 0.0
    %271 = vmatpush1.msra.mxu0 0.0
    %272 = vmatprep.subr.mxu0 0.0
    %273 = vmatpush1.msra.mxu0 0.0
    %274 = vmatprep.subr.mxu0 0.0
    %275 = vmatpush1.msra.mxu0 0.0
    %276 = vmatprep.subr.mxu0 0.0
    %277 = vmatpush1.msra.mxu0 0.0
    %278 = vmatprep.subr.mxu0 0.0
    %279 = vmatpush1.msra.mxu0 0.0
    %280 = vmatprep.subr.mxu0 0.0
    %281 = vmatpush1.msra.mxu0 0.0
    %282 = vmatprep.mubr.f32.mxu0 0.0
    %283 = vmatmul.mubr.f32.gmra.mrb[0].mxu0 %v210
    %v284 = vpop.f32.mrb[0].mxu0
    %v285 = vadd.f32 0.0, %v284
    %v286 = vpop.f32.mrb[0].mxu0
    %287 = vmatprep.mubr.f32.mxu0 0.0
    %288 = vmatmul.mubr.f32.gmra.mrb[0].mxu0 %v212
    %v289 = vpop.f32.mrb[0].mxu0
    %v290 = vadd.f32 0.0, %v289
    %v291 = vpop.f32.mrb[0].mxu0
    %292 = vmatprep.mubr.f32.mxu0 0.0
    %293 = vmatmul.mubr.f32.gmra.mrb[0].mxu0 %v214
    %v294 = vpop.f32.mrb[0].mxu0
    %v295 = vadd.f32 0.0, %v294
    %v296 = vpop.f32.mrb[0].mxu0
    %297 = vmatprep.mubr.f32.mxu0 0.0
    %298 = vmatmul.mubr.f32.gmra.mrb[0].mxu0 %v216
    %v299 = vpop.f32.mrb[0].mxu0
    %v300 = vadd.f32 0.0, %v299
    %v301 = vpop.f32.mrb[0].mxu0
    %302 = vdwg.mxu0
    %v303 = vmul.f32 %v285, %v166
    %v304 = vmul.f32 %v290, %v166
    %v305 = vmul.f32 %v295, %v170
    %v306 = vmul.f32 %v300, %v170
    %v307 = vand.u32 2147483647, %v285
    %v308 = vand.u32 2147483647, %v290
    %v309 = vand.u32 2147483647, %v295
    %v310 = vand.u32 2147483647, %v300
    %v311 = vstv %s25
    %v312 = vmul.f32 %v311, %v307
    %v313 = vmul.f32 %v311, %v308
    %v314 = vmul.f32 %v311, %v309
    %v315 = vmul.f32 %v311, %v310
    %v316 = vadd.f32 %v303, %v312
    %v317 = vadd.f32 %v304, %v313
    %v318 = vadd.f32 %v305, %v314
    %v319 = vadd.f32 %v306, %v315
    %vm320 = vcmask 523264
    %v321 = vsel %vm320, %v316, 0.0
    %322 = vadd.xlane.f32.xlu0 %v321
    %v323 = vpop.xlane.xlu0 %322
    %v324 = vsel %vm320, %v317, 0.0
    %325 = vadd.xlane.f32.xlu0 %v324
    %v326 = vpop.xlane.xlu0 %325
    %v327 = vsel %vm320, %v318, 0.0
    %328 = vadd.xlane.f32.xlu0 %v327
    %v329 = vpop.xlane.xlu0 %328
    %v330 = vsel %vm320, %v319, 0.0
    %331 = vadd.xlane.f32.xlu0 %v330
    %v332 = vpop.xlane.xlu0 %331
    %v333 = vsub.f32 0.0, %v323
    %v334 = vsub.f32 0.0, %v326
    %v335 = vsub.f32 0.0, %v329
    %v336 = vsub.f32 0.0, %v332
    %v337 = vmax.f32 %v189, 0.0
    %v338 = vmax.f32 %v190, 0.0
    %v339 = vmax.f32 %v191, 0.0
    %v340 = vmax.f32 %v192, 0.0
    %341 = vrot.lane.b32.xlu0 %v166, 96
    %v342 = vpop.permute.xlu0 %341
    %343 = vrot.lane.b32.xlu0 %v170, 96
    %v344 = vpop.permute.xlu0 %343
    %v347 = vmul.f32 %v337, %v342
    %v348 = vmul.f32 %v338, %v342
    %v349 = vmul.f32 %v339, %v344
    %v350 = vmul.f32 %v340, %v344
    %v352 = vlaneseq
    %v353 = vshrl.u32 %v352, 7
    %v354 = vsub.s32 0, %v353
    %v355 = vrot.slane %v54, %v354
    %356 = vrot.lane.b32.xlu0 %v355, 64
    %v357 = vpop.permute.xlu0 %356
    %v359 = vmul.f32 %v189, %v357
    %v360 = vmul.f32 %v190, %v357
    %v361 = vmul.f32 %v191, %v357
    %v362 = vmul.f32 %v192, %v357
    %v363 = vsub.f32 %v347, %v359
    %v364 = vsub.f32 %v348, %v360
    %v365 = vsub.f32 %v349, %v361
    %v366 = vsub.f32 %v350, %v362
    %371 = vrot.lane.b32.xlu0 %v363, 64
    %v372 = vpop.permute.xlu0 %371
    %373 = vrot.lane.b32.xlu0 %v364, 64
    %v374 = vpop.permute.xlu0 %373
    %375 = vrot.lane.b32.xlu0 %v365, 64
    %v376 = vpop.permute.xlu0 %375
    %377 = vrot.lane.b32.xlu0 %v366, 64
    %v378 = vpop.permute.xlu0 %377
    %v383 = vsel %vm209, %v372, 0.0
    %384 = vadd.xlane.f32.xlu0 %v383
    %v385 = vpop.xlane.xlu0 %384
    %v386 = vsel %vm209, %v374, 0.0
    %387 = vadd.xlane.f32.xlu0 %v386
    %v388 = vpop.xlane.xlu0 %387
    %v389 = vsel %vm209, %v376, 0.0
    %390 = vadd.xlane.f32.xlu0 %v389
    %v391 = vpop.xlane.xlu0 %390
    %v392 = vsel %vm209, %v378, 0.0
    %393 = vadd.xlane.f32.xlu0 %v392
    %v394 = vpop.xlane.xlu0 %393
    %395 = vrot.lane.b32.xlu0 %v355, 96
    %v396 = vpop.permute.xlu0 %395
    %v398 = vmul.f32 %v26, %v396
    %v399 = vmul.f32 %v27, %v396
    %v400 = vmul.f32 %v28, %v396
    %v401 = vmul.f32 %v29, %v396
    %v402 = vsel %vm61, %v398, 0.0
    %403 = vadd.xlane.f32.xlu0 %v402
    %v404 = vpop.xlane.xlu0 %403
    %v405 = vsel %vm61, %v399, 0.0
    %406 = vadd.xlane.f32.xlu0 %v405
    %v407 = vpop.xlane.xlu0 %406
    %v408 = vsel %vm61, %v400, 0.0
    %409 = vadd.xlane.f32.xlu0 %v408
    %v410 = vpop.xlane.xlu0 %409
    %v411 = vsel %vm61, %v401, 0.0
    %412 = vadd.xlane.f32.xlu0 %v411
    %v413 = vpop.xlane.xlu0 %412
    %v414 = vadd.f32 %v333, %v385
    %v415 = vadd.f32 %v334, %v388
    %v416 = vadd.f32 %v335, %v391
    %v417 = vadd.f32 %v336, %v394
    %v418 = vadd.f32 %v414, %v404
    %v419 = vadd.f32 %v415, %v407
    %v420 = vadd.f32 %v416, %v410
    %v421 = vadd.f32 %v417, %v413
    %v426 = vlaneseq
    %v427 = vand.u32 %v426, 127
    %v428 = vlaneseq
    %v429 = vshrl.u32 %v428, 7
    %v430 = vsub.s32 %v427, %v429
    %v431 = vrot.slane %v418, %v430
    %v432 = vadd.s32 %v427, 4294967288
    %v433 = vlaneseq
    %v434 = vshrl.u32 %v433, 7
    %v435 = vsub.s32 %v432, %v434
    %v436 = vrot.slane %v419, %v435
    %vm437 = vcmask 130112
    %v438 = vsel %vm437, %v436, %v431
    %v439 = vlaneseq
    %v440 = vshrl.u32 %v439, 7
    %v441 = vsub.s32 %v427, %v440
    %v442 = vrot.slane %v420, %v441
    %v443 = vlaneseq
    %v444 = vshrl.u32 %v443, 7
    %v445 = vsub.s32 %v432, %v444
    %v446 = vrot.slane %v421, %v445
    %v447 = vsel %vm437, %v446, %v442
    %vm448 = vcmask 1041409
    %v449 = vsel %vm448, %v447, %v438
    %vm451 = vcmask 123904
    %452 = vst.msk [vmem:[#allocation3] sm:$0x3] %vm451, %v449
    // Predicated region
    $region26: #{tpu_custom_call.1} parent=1 // pred_check
      _
    $region27: #{tpu_custom_call.1} parent=1 // pred_check_branch
      %454 = sbr.rel (0) target = $region29
    $region28: #{tpu_custom_call.1} parent=1 // pred_region
      %s456 = ssub.s32 32, 32
      %457 = vsyncadd [#allocation4], %s456
      %s459 = sshll.u32 [#allocation3], 4
      %s460 = int_to_ptr.vmem [resolvable:$true] %s459
      %462 = dma.vmem_to_hbm [thread:$0]  %s460, 32, %s6, [#allocation4]
    $region29: #{tpu_custom_call.1} parent=1 // pred_fallthru
      _
    // Predicated region
    $region30: #{tpu_custom_call.1} parent=1 // pred_check
      _
    $region31: #{tpu_custom_call.1} parent=1 // pred_check_branch
      %464 = sbr.rel (0) target = $region33
    $region32: #{tpu_custom_call.1} parent=1 // pred_region
      %465 = dma.done [#allocation4], 32
    $region33: #{tpu_custom_call.1} parent=1 // pred_fallthru
      _
    %466 = vsyncpa [#allocation4], 1

</llo_original>
